<compile_context>
chip_gen: v6e
topology: v6e:2x2x1
jax: 0.10.0
libtpu: 0.0.40
codegen_flags: <defaults>
</compile_context>

<pallas_src>
import jax
import jax.numpy as jnp
from jax.experimental import pallas as pl
from jax.experimental.pallas import tpu as pltpu

F32 = jnp.float32
BF16 = jnp.bfloat16


# ---------------------------- Pallas kernel ----------------------------

def _se_basic_block_kernel(x_ref, w_ref, b_ref, fc1_ref, fc2_ref, o_ref):
    # x_ref  : (B, C, L) f32   input, channels-first, L on the 128-lane axis
    # w_ref  : (C, 3C)   bf16  conv weight with BN scale folded in; W[o, t*C+i] = w[o,i,t]
    # b_ref  : (C, 1)    f32   folded BN bias
    # fc1_ref: (C//4, C) f32   SE first FC  (torch Linear weight layout)
    # fc2_ref: (C, C//4) f32   SE second FC
    # o_ref  : (B, C, L) f32
    B, C, L = o_ref.shape

    # im2col with in-kernel halo: taps built by lane rotation + edge mask, batch
    # stacked along the lane/N axis -> one wide-K, wide-N MXU dot.
    lane = jax.lax.broadcasted_iota(jnp.int32, (C, L), 1)
    cols = []
    for b in range(B):                                   # static unroll, B is tiny
        xc = x_ref[b]                                    # (C, L) f32, aligned load
        left = jnp.where(lane == 0, 0.0, pltpu.roll(xc, shift=1, axis=1))       # x[l-1]
        right = jnp.where(lane == L - 1, 0.0, pltpu.roll(xc, shift=L - 1, axis=1))  # x[l+1]
        cols.append(jnp.concatenate([left, xc, right], axis=0).astype(BF16))    # (3C, L)
    xw = jnp.concatenate(cols, axis=1)                   # (3C, B*L) bf16

    # Grouped 3-tap conv + BN scale as a single MXU matmul, f32 accumulation.
    acc = jnp.dot(w_ref[...], xw, preferred_element_type=F32)      # (C, B*L) f32
    h = jnp.maximum(acc + b_ref[...], 0.0)                         # BN bias + ReLU

    # SE: per-batch channel mean (XLU lane reduce), FCs + sigmoid on the narrow (C, B).
    m = jnp.concatenate(
        [jnp.sum(h[:, b * L:(b + 1) * L], axis=-1, keepdims=True) * (1.0 / L)
         for b in range(B)], axis=1)                               # (C, B) f32
    z = jnp.maximum(jnp.dot(fc1_ref[...], m, preferred_element_type=F32), 0.0)  # (C//4, B)
    y = jax.nn.sigmoid(jnp.dot(fc2_ref[...], z, preferred_element_type=F32))    # (C, B)

    # Gate + residual; each store is an aligned, lane-dense (C, 128) slab.
    for b in range(B):
        hb = h[:, b * L:(b + 1) * L]                               # aligned lane slice
        o_ref[b] = (x_ref[b] + hb * y[:, b:b + 1]).astype(o_ref.dtype)


# ---------------------------- wrapper ----------------------------

def se_basic_block(x, params):
    # x: (B, C, L) channels-first (same as torch NCL).
    B, C, L = x.shape
    r = params['fc1'].shape[0]
    flops = 2 * C * (3 * C) * (B * L) + 2 * B * (r * C + C * r) + 8 * B * C * L
    bytes_accessed = (2 * 4 * B * C * L          # x in + out (f32)
                      + 2 * C * 3 * C            # conv weight (bf16)
                      + 4 * C                    # BN bias
                      + 4 * 2 * r * C)           # fc1 + fc2 (f32)
    return pl.pallas_call(
        _se_basic_block_kernel,
        out_shape=jax.ShapeDtypeStruct((B, C, L), x.dtype),
        grid=(1,),
        in_specs=[
            pl.BlockSpec((B, C, L), lambda i: (0, 0, 0)),
            pl.BlockSpec((C, 3 * C), lambda i: (0, 0)),
            pl.BlockSpec((C, 1), lambda i: (0, 0)),
            pl.BlockSpec((r, C), lambda i: (0, 0)),
            pl.BlockSpec((C, r), lambda i: (0, 0)),
        ],
        out_specs=pl.BlockSpec((B, C, L), lambda i: (0, 0, 0)),
        compiler_params=pltpu.CompilerParams(dimension_semantics=("arbitrary",)),
        cost_estimate=pl.CostEstimate(flops=flops, transcendentals=B * C,
                                      bytes_accessed=bytes_accessed),
    )(x, params['w2d_bn'], params['bias2d'], params['fc1'], params['fc2'])


# ---------------------------- parameters ----------------------------

def make_params(key, C, reduction=4, groups_div=16, eps=1e-5):
    ks = jax.random.split(key, 7)
    # Grouped 3-tap conv weight, torch layout (Cout, Cin, k), densified with a
    # block-diagonal group mask (exact semantics of groups=C//16).
    w = jax.random.normal(ks[0], (C, C, 3), F32) / jnp.sqrt(3.0 * groups_div)
    gid = jnp.arange(C) // groups_div
    mask = (gid[:, None] == gid[None, :]).astype(F32)
    w = w * mask[:, :, None]

    # BatchNorm1d folded to inference-mode scale/bias.
    # TODO(synk): training-mode batch statistics are not modeled (inference BN only).
    gamma = 1.0 + 0.1 * jax.random.normal(ks[1], (C,), F32)
    beta = 0.05 * jax.random.normal(ks[2], (C,), F32)
    mean = 0.05 * jax.random.normal(ks[3], (C,), F32)
    var = 1.0 + 0.1 * jnp.abs(jax.random.normal(ks[4], (C,), F32))
    scale = gamma / jnp.sqrt(var + eps)
    bias = beta - mean * scale

    r = C // reduction
    fc1 = jax.random.normal(ks[5], (r, C), F32) / jnp.sqrt(C)   # Linear(C, C/4).weight
    fc2 = jax.random.normal(ks[6], (C, r), F32) / jnp.sqrt(r)   # Linear(C/4, C).weight

    # Kernel-side packed conv weight: W[o, t*C + i] = w[o, i, t], with the BN scale
    # folded per output row in f32 BEFORE the bf16 cast.
    w2d = jnp.transpose(w, (0, 2, 1)).reshape(C, 3 * C)
    w2d_bn = (scale[:, None] * w2d).astype(BF16)

    return dict(
        w3=w, scale=scale, bias=bias, fc1=fc1, fc2=fc2,
        w2d_bn=w2d_bn, bias2d=bias.reshape(C, 1),
    )


# ---------------------------- pure-JAX reference ----------------------------

def _ref_forward(x, p):
    B, C, L = x.shape
    xp = jnp.pad(x, ((0, 0), (0, 0), (1, 1)))
    acc = sum(jnp.einsum('oi,bil->bol', p['w3'][:, :, t], xp[:, :, t:t + L],
                         precision='highest') for t in range(3))
    h = jnp.maximum(acc * p['scale'][None, :, None] + p['bias'][None, :, None], 0.0)
    m = h.mean(axis=-1)                                          # (B, C)
    z = jnp.maximum(jnp.einsum('rc,bc->br', p['fc1'], m, precision='highest'), 0.0)
    y = jax.nn.sigmoid(jnp.einsum('cr,br->bc', p['fc2'], z, precision='highest'))
    return x + h * y[:, :, None]


# ---------------------------- main ----------------------------

if __name__ == "__main__":
    B, C, L = 2, 32, 128          # C must be a multiple of 16 (groups = C // 16)

    key = jax.random.PRNGKey(0)
    kp, kx = jax.random.split(key)
    params = make_params(kp, C)
    x = 0.5 * jax.random.normal(kx, (B, C, L), F32)   # torch layout (B, C, L)

    fwd = jax.jit(lambda a: se_basic_block(a, params))
    out = fwd(x)
    jax.block_until_ready(out)

    ref = _ref_forward(x, params)
    assert out.shape == (B, C, L)
    assert bool(jnp.all(jnp.isfinite(out)))
    err = float(jnp.max(jnp.abs(out - ref)))
    assert jnp.allclose(out, ref, atol=2e-2, rtol=2e-2), err
    print("KERNEL_OK")
</pallas_src>

<mosaic_0001>
module attributes {stable_mosaic.version = 11 : i64} {
  func.func @_se_basic_block_kernel(%arg0: i32, %arg1: memref<2x32x128xf32, #tpu.memory_space<vmem>>, %arg2: memref<32x96xbf16, #tpu.memory_space<vmem>>, %arg3: memref<32x1xf32, #tpu.memory_space<vmem>>, %arg4: memref<8x32xf32, #tpu.memory_space<vmem>>, %arg5: memref<32x8xf32, #tpu.memory_space<vmem>>, %arg6: memref<2x32x128xf32, #tpu.memory_space<vmem>>) attributes {dimension_semantics = [#tpu.dimension_semantics<arbitrary>], iteration_bounds = array<i64: 1>, scalar_prefetch = 0 : i64, scratch_operands = 0 : i64, tpu.core_type = #tpu.core_type<tc>, window_params = [{pipeline_mode = #tpu.pipeline_mode<synchronous>, transform_indices = @transform_0, window_bounds = array<i64: 2, 32, 128>}, {pipeline_mode = #tpu.pipeline_mode<synchronous>, transform_indices = @transform_1, window_bounds = array<i64: 32, 96>}, {pipeline_mode = #tpu.pipeline_mode<synchronous>, transform_indices = @transform_2, window_bounds = array<i64: 32, 1>}, {pipeline_mode = #tpu.pipeline_mode<synchronous>, transform_indices = @transform_3, window_bounds = array<i64: 8, 32>}, {pipeline_mode = #tpu.pipeline_mode<synchronous>, transform_indices = @transform_4, window_bounds = array<i64: 32, 8>}, {pipeline_mode = #tpu.pipeline_mode<synchronous>, transform_indices = @transform_5, window_bounds = array<i64: 2, 32, 128>}]} {
    %0 = tpu.iota {dimensions = array<i32: 1>} : vector<32x128xi32>
    %c0 = arith.constant 0 : index
    %c0_0 = arith.constant 0 : index
    %c0_1 = arith.constant 0 : index
    %1 = vector.load %arg1[%c0, %c0_0, %c0_1] : memref<2x32x128xf32, #tpu.memory_space<vmem>>, vector<1x32x128xf32>
    %2 = vector.shape_cast %1 : vector<1x32x128xf32> to vector<32x128xf32>
    %c0_i32 = arith.constant 0 : i32
    %3 = vector.broadcast %c0_i32 : i32 to vector<32x128xi32>
    %4 = arith.cmpi eq, %0, %3 : vector<32x128xi32>
    %c1_i32 = arith.constant 1 : i32
    %5 = tpu.dynamic_rotate %2 by %c1_i32 dim 1 : vector<32x128xf32>, i32 -> vector<32x128xf32>
    %cst = arith.constant 0.000000e+00 : f32
    %6 = vector.broadcast %cst : f32 to vector<32x128xf32>
    %7 = arith.select %4, %6, %5 : vector<32x128xi1>, vector<32x128xf32>
    %c127_i32 = arith.constant 127 : i32
    %8 = vector.broadcast %c127_i32 : i32 to vector<32x128xi32>
    %9 = arith.cmpi eq, %0, %8 : vector<32x128xi32>
    %c127_i32_2 = arith.constant 127 : i32
    %10 = tpu.dynamic_rotate %2 by %c127_i32_2 dim 1 : vector<32x128xf32>, i32 -> vector<32x128xf32>
    %cst_3 = arith.constant 0.000000e+00 : f32
    %11 = vector.broadcast %cst_3 : f32 to vector<32x128xf32>
    %12 = arith.select %9, %11, %10 : vector<32x128xi1>, vector<32x128xf32>
    %13 = tpu.concatenate %7, %2, %12 in 0 : vector<32x128xf32>, vector<32x128xf32>, vector<32x128xf32> -> vector<96x128xf32>
    %14 = arith.truncf %13 : vector<96x128xf32> to vector<96x128xbf16>
    %c1 = arith.constant 1 : index
    %c0_4 = arith.constant 0 : index
    %c0_5 = arith.constant 0 : index
    %15 = vector.load %arg1[%c1, %c0_4, %c0_5] : memref<2x32x128xf32, #tpu.memory_space<vmem>>, vector<1x32x128xf32>
    %16 = vector.shape_cast %15 : vector<1x32x128xf32> to vector<32x128xf32>
    %c0_i32_6 = arith.constant 0 : i32
    %17 = vector.broadcast %c0_i32_6 : i32 to vector<32x128xi32>
    %18 = arith.cmpi eq, %0, %17 : vector<32x128xi32>
    %c1_i32_7 = arith.constant 1 : i32
    %19 = tpu.dynamic_rotate %16 by %c1_i32_7 dim 1 : vector<32x128xf32>, i32 -> vector<32x128xf32>
    %cst_8 = arith.constant 0.000000e+00 : f32
    %20 = vector.broadcast %cst_8 : f32 to vector<32x128xf32>
    %21 = arith.select %18, %20, %19 : vector<32x128xi1>, vector<32x128xf32>
    %c127_i32_9 = arith.constant 127 : i32
    %22 = vector.broadcast %c127_i32_9 : i32 to vector<32x128xi32>
    %23 = arith.cmpi eq, %0, %22 : vector<32x128xi32>
    %c127_i32_10 = arith.constant 127 : i32
    %24 = tpu.dynamic_rotate %16 by %c127_i32_10 dim 1 : vector<32x128xf32>, i32 -> vector<32x128xf32>
    %cst_11 = arith.constant 0.000000e+00 : f32
    %25 = vector.broadcast %cst_11 : f32 to vector<32x128xf32>
    %26 = arith.select %23, %25, %24 : vector<32x128xi1>, vector<32x128xf32>
    %27 = tpu.concatenate %21, %16, %26 in 0 : vector<32x128xf32>, vector<32x128xf32>, vector<32x128xf32> -> vector<96x128xf32>
    %28 = arith.truncf %27 : vector<96x128xf32> to vector<96x128xbf16>
    %29 = tpu.concatenate %14, %28 in 1 : vector<96x128xbf16>, vector<96x128xbf16> -> vector<96x256xbf16>
    %c0_12 = arith.constant 0 : index
    %c0_13 = arith.constant 0 : index
    %30 = vector.load %arg2[%c0_12, %c0_13] : memref<32x96xbf16, #tpu.memory_space<vmem>>, vector<32x96xbf16>
    %cst_14 = arith.constant dense<0.000000e+00> : vector<32x256xf32>
    %31 = tpu.matmul %30, %29, %cst_14 {dimension_numbers = #tpu.dot_dimension_numbers<[1], [0], [0], [1], [0, 0, 1, 1], [], []>} : vector<32x96xbf16>, vector<96x256xbf16>, vector<32x256xf32> -> vector<32x256xf32>
    %c0_15 = arith.constant 0 : index
    %c0_16 = arith.constant 0 : index
    %32 = vector.load %arg3[%c0_15, %c0_16] : memref<32x1xf32, #tpu.memory_space<vmem>>, vector<32x1xf32>
    %33 = vector.broadcast %32 : vector<32x1xf32> to vector<32x256xf32>
    %34 = arith.addf %31, %33 : vector<32x256xf32>
    %cst_17 = arith.constant 0.000000e+00 : f32
    %35 = vector.broadcast %cst_17 : f32 to vector<32x256xf32>
    %36 = arith.maximumf %34, %35 : vector<32x256xf32>
    %37 = vector.extract_strided_slice %36 {offsets = [0, 0], sizes = [32, 128], strides = [1, 1]} : vector<32x256xf32> to vector<32x128xf32>
    %cst_18 = arith.constant dense<0.000000e+00> : vector<32xf32>
    %38 = vector.multi_reduction <add>, %37, %cst_18 [1] : vector<32x128xf32> to vector<32xf32>
    %39 = vector.shape_cast %38 : vector<32xf32> to vector<32x1xf32>
    %cst_19 = arith.constant 7.812500e-03 : f32
    %40 = vector.broadcast %cst_19 : f32 to vector<32x1xf32>
    %41 = arith.mulf %39, %40 : vector<32x1xf32>
    %42 = vector.extract_strided_slice %36 {offsets = [0, 128], sizes = [32, 128], strides = [1, 1]} : vector<32x256xf32> to vector<32x128xf32>
    %cst_20 = arith.constant dense<0.000000e+00> : vector<32xf32>
    %43 = vector.multi_reduction <add>, %42, %cst_20 [1] : vector<32x128xf32> to vector<32xf32>
    %44 = vector.shape_cast %43 : vector<32xf32> to vector<32x1xf32>
    %cst_21 = arith.constant 7.812500e-03 : f32
    %45 = vector.broadcast %cst_21 : f32 to vector<32x1xf32>
    %46 = arith.mulf %44, %45 : vector<32x1xf32>
    %47 = tpu.concatenate %41, %46 in 1 : vector<32x1xf32>, vector<32x1xf32> -> vector<32x2xf32>
    %c0_22 = arith.constant 0 : index
    %c0_23 = arith.constant 0 : index
    %48 = vector.load %arg4[%c0_22, %c0_23] : memref<8x32xf32, #tpu.memory_space<vmem>>, vector<8x32xf32>
    %cst_24 = arith.constant dense<0.000000e+00> : vector<8x2xf32>
    %49 = tpu.matmul %48, %47, %cst_24 {dimension_numbers = #tpu.dot_dimension_numbers<[1], [0], [0], [1], [0, 0, 1, 1], [], []>} : vector<8x32xf32>, vector<32x2xf32>, vector<8x2xf32> -> vector<8x2xf32>
    %cst_25 = arith.constant 0.000000e+00 : f32
    %50 = vector.broadcast %cst_25 : f32 to vector<8x2xf32>
    %51 = arith.maximumf %49, %50 : vector<8x2xf32>
    %c0_26 = arith.constant 0 : index
    %c0_27 = arith.constant 0 : index
    %52 = vector.load %arg5[%c0_26, %c0_27] : memref<32x8xf32, #tpu.memory_space<vmem>>, vector<32x8xf32>
    %cst_28 = arith.constant dense<0.000000e+00> : vector<32x2xf32>
    %53 = tpu.matmul %52, %51, %cst_28 {dimension_numbers = #tpu.dot_dimension_numbers<[1], [0], [0], [1], [0, 0, 1, 1], [], []>} : vector<32x8xf32>, vector<8x2xf32>, vector<32x2xf32> -> vector<32x2xf32>
    %54 = arith.negf %53 : vector<32x2xf32>
    %55 = math.exp %54 : vector<32x2xf32>
    %cst_29 = arith.constant 1.000000e+00 : f32
    %56 = vector.broadcast %cst_29 : f32 to vector<32x2xf32>
    %57 = arith.addf %56, %55 : vector<32x2xf32>
    %58 = arith.divf %56, %57 : vector<32x2xf32>
    %59 = vector.extract_strided_slice %36 {offsets = [0, 0], sizes = [32, 128], strides = [1, 1]} : vector<32x256xf32> to vector<32x128xf32>
    %c0_30 = arith.constant 0 : index
    %c0_31 = arith.constant 0 : index
    %c0_32 = arith.constant 0 : index
    %60 = vector.load %arg1[%c0_30, %c0_31, %c0_32] : memref<2x32x128xf32, #tpu.memory_space<vmem>>, vector<1x32x128xf32>
    %61 = vector.shape_cast %60 : vector<1x32x128xf32> to vector<32x128xf32>
    %62 = vector.extract_strided_slice %58 {offsets = [0, 0], sizes = [32, 1], strides = [1, 1]} : vector<32x2xf32> to vector<32x1xf32>
    %63 = vector.broadcast %62 : vector<32x1xf32> to vector<32x128xf32>
    %64 = arith.mulf %59, %63 : vector<32x128xf32>
    %65 = arith.addf %61, %64 : vector<32x128xf32>
    %c0_33 = arith.constant 0 : index
    %c0_34 = arith.constant 0 : index
    %c0_35 = arith.constant 0 : index
    %66 = vector.load %arg6[%c0_33, %c0_34, %c0_35] : memref<2x32x128xf32, #tpu.memory_space<vmem>>, vector<1x32x128xf32>
    %67 = vector.shape_cast %66 : vector<1x32x128xf32> to vector<32x128xf32>
    %68 = vector.shape_cast %65 : vector<32x128xf32> to vector<1x32x128xf32>
    tpu.vector_store %arg6[%c0_33, %c0_34, %c0_35], %68 {strides = array<i32>} : memref<2x32x128xf32, #tpu.memory_space<vmem>>, vector<1x32x128xf32>,
    %69 = vector.extract_strided_slice %36 {offsets = [0, 128], sizes = [32, 128], strides = [1, 1]} : vector<32x256xf32> to vector<32x128xf32>
    %c1_36 = arith.constant 1 : index
    %c0_37 = arith.constant 0 : index
    %c0_38 = arith.constant 0 : index
    %70 = vector.load %arg1[%c1_36, %c0_37, %c0_38] : memref<2x32x128xf32, #tpu.memory_space<vmem>>, vector<1x32x128xf32>
    %71 = vector.shape_cast %70 : vector<1x32x128xf32> to vector<32x128xf32>
    %72 = vector.extract_strided_slice %58 {offsets = [0, 1], sizes = [32, 1], strides = [1, 1]} : vector<32x2xf32> to vector<32x1xf32>
    %73 = vector.broadcast %72 : vector<32x1xf32> to vector<32x128xf32>
    %74 = arith.mulf %69, %73 : vector<32x128xf32>
    %75 = arith.addf %71, %74 : vector<32x128xf32>
    %c1_39 = arith.constant 1 : index
    %c0_40 = arith.constant 0 : index
    %c0_41 = arith.constant 0 : index
    %76 = vector.load %arg6[%c1_39, %c0_40, %c0_41] : memref<2x32x128xf32, #tpu.memory_space<vmem>>, vector<1x32x128xf32>
    %77 = vector.shape_cast %76 : vector<1x32x128xf32> to vector<32x128xf32>
    %78 = vector.shape_cast %75 : vector<32x128xf32> to vector<1x32x128xf32>
    tpu.vector_store %arg6[%c1_39, %c0_40, %c0_41], %78 {strides = array<i32>} : memref<2x32x128xf32, #tpu.memory_space<vmem>>, vector<1x32x128xf32>,
    return
  }
  func.func @transform_0(%arg0: i32) -> (i32, i32, i32) {
    %c0_i32 = arith.constant 0 : i32
    %c0_i32_0 = arith.constant 0 : i32
    %c0_i32_1 = arith.constant 0 : i32
    %c0_i32_2 = arith.constant 0 : i32
    return %c0_i32, %c0_i32_0, %c0_i32_1 : i32, i32, i32
  }
  func.func @transform_1(%arg0: i32) -> (i32, i32) {
    %c0_i32 = arith.constant 0 : i32
    %c0_i32_0 = arith.constant 0 : i32
    %c0_i32_1 = arith.constant 0 : i32
    return %c0_i32, %c0_i32_0 : i32, i32
  }
  func.func @transform_2(%arg0: i32) -> (i32, i32) {
    %c0_i32 = arith.constant 0 : i32
    %c0_i32_0 = arith.constant 0 : i32
    %c0_i32_1 = arith.constant 0 : i32
    return %c0_i32, %c0_i32_0 : i32, i32
  }
  func.func @transform_3(%arg0: i32) -> (i32, i32) {
    %c0_i32 = arith.constant 0 : i32
    %c0_i32_0 = arith.constant 0 : i32
    %c0_i32_1 = arith.constant 0 : i32
    return %c0_i32, %c0_i32_0 : i32, i32
  }
  func.func @transform_4(%arg0: i32) -> (i32, i32) {
    %c0_i32 = arith.constant 0 : i32
    %c0_i32_0 = arith.constant 0 : i32
    %c0_i32_1 = arith.constant 0 : i32
    return %c0_i32, %c0_i32_0 : i32, i32
  }
  func.func @transform_5(%arg0: i32) -> (i32, i32, i32) {
    %c0_i32 = arith.constant 0 : i32
    %c0_i32_0 = arith.constant 0 : i32
    %c0_i32_1 = arith.constant 0 : i32
    %c0_i32_2 = arith.constant 0 : i32
    return %c0_i32, %c0_i32_0, %c0_i32_1 : i32, i32, i32
  }
}

</mosaic_0001>

<llo_original>
// kernel: _lambda_.1
$region0: #{_lambda_.1}
  #allocation0 [shape = 'u32[]', space=smem, size = 0x4, offset = 0x4, fixed_abs, tag = 'smem constant byte address 0x4 - core index']
  #allocation1 [shape = 'u32[144,128]{1,0:T(1,128)}', space=vmem, size = 0x12000, scoped, tag = 'internal scratch']
  %s0 = inlined_call_operand.hbm [shape: f32[2,32,128], index: 0, kind: input, shape index: {}]
  %s1 = inlined_call_operand.hbm [shape: bf16[32,96], index: 1, kind: input, shape index: {}]
  %s2 = inlined_call_operand.hbm [shape: f32[32,1], index: 2, kind: input, shape index: {}]
  %s3 = inlined_call_operand.hbm [shape: f32[8,32], index: 3, kind: input, shape index: {}]
  %s4 = inlined_call_operand.hbm [shape: f32[32,8], index: 4, kind: input, shape index: {}]
  %s5 = inlined_call_operand.hbm [shape: f32[2,32,128], index: 5, kind: output, shape index: {}]
  %s6 = sld [smem:[#allocation0]]
  $region50: #{_lambda_.1} parent=0
    _
  %s8 = ssub.s32 1, %s6
  %s9 = scalar_select 0, %s8, %s6
  $region1: #{_lambda_.1} parent=0
    #allocation2 [shape = 'u8[32768]{0}', space=vmem, size = 0x8000, scoped, tag = 'input window, operand 0, single buffered']
    #allocation3 [shape = 's32[1]{0}', space=sflag, size = 0x4, scoped, tag = 'scoped memory for _lambda_.1']
    #allocation4 [shape = 's32[1]{0}', space=sflag, size = 0x4, scoped, tag = 'scoped memory for _lambda_.1']
    #allocation5 [shape = 'u8[8192]{0}', space=vmem, size = 0x2000, scoped, tag = 'input window, operand 1, single buffered']
    #allocation6 [shape = 's32[1]{0}', space=sflag, size = 0x4, scoped, tag = 'scoped memory for _lambda_.1']
    #allocation7 [shape = 'u8[16384]{0}', space=vmem, size = 0x4000, scoped, tag = 'input window, operand 2, single buffered']
    #allocation8 [shape = 'u8[4096]{0}', space=vmem, size = 0x1000, scoped, tag = 'input window, operand 3, single buffered']
    #allocation9 [shape = 's32[1]{0}', space=sflag, size = 0x4, scoped, tag = 'scoped memory for _lambda_.1']
    #allocation10 [shape = 'u8[16384]{0}', space=vmem, size = 0x4000, scoped, tag = 'input window, operand 4, single buffered']
    #allocation11 [shape = 'u8[32768]{0}', space=vmem, size = 0x8000, scoped, tag = 'output window, operand 0, single buffered']
    %10 = vsyncpa [#allocation3], 0
    %11 = vsyncpa [#allocation6], 0
    %12 = vsyncpa [#allocation9], 0
    %13 = vsyncpa [#allocation4], 0
    // Predicated region
    $region2: #{_lambda_.1} parent=1 // pred_check
      _
    $region3: #{_lambda_.1} parent=1 // pred_check_branch
      %15 = sbr.rel (0) target = $region5
    $region4: #{_lambda_.1} parent=1 // pred_region
      %s17 = ssub.s32 1024, 1024
      %18 = vsyncadd [#allocation3], %s17
      %s19 = sshll.u32 [#allocation2], 4
      %s20 = int_to_ptr.vmem [resolvable:$true] %s19
      %25 = dma.hbm_to_vmem [thread:$0]  %s0, 1024, %s20, [#allocation3], 128, 128, 8
    $region5: #{_lambda_.1} parent=1 // pred_fallthru
      _
    // Predicated region
    $region6: #{_lambda_.1} parent=1 // pred_check
      _
    $region7: #{_lambda_.1} parent=1 // pred_check_branch
      %27 = sbr.rel (0) target = $region9
    $region8: #{_lambda_.1} parent=1 // pred_region
      %s29 = ssub.s32 256, 256
      %30 = vsyncadd [#allocation6], %s29
      %s31 = sshll.u32 [#allocation5], 4
      %s32 = int_to_ptr.vmem [resolvable:$true] %s31
      %37 = dma.hbm_to_vmem [thread:$0]  %s1, 256, %s32, [#allocation6], 64, 64, 4
    $region9: #{_lambda_.1} parent=1 // pred_fallthru
      _
    // Predicated region
    $region10: #{_lambda_.1} parent=1 // pred_check
      _
    $region11: #{_lambda_.1} parent=1 // pred_check_branch
      %39 = sbr.rel (0) target = $region13
    $region12: #{_lambda_.1} parent=1 // pred_region
      %s41 = ssub.s32 512, 512
      %42 = vsyncadd [#allocation6], %s41
      %s43 = sshll.u32 [#allocation7], 4
      %s44 = int_to_ptr.vmem [resolvable:$true] %s43
      %49 = dma.hbm_to_vmem [thread:$0]  %s2, 512, %s44, [#allocation6], 128, 128, 8
    $region13: #{_lambda_.1} parent=1 // pred_fallthru
      _
    // Predicated region
    $region14: #{_lambda_.1} parent=1 // pred_check
      _
    $region15: #{_lambda_.1} parent=1 // pred_check_branch
      %51 = sbr.rel (0) target = $region17
    $region16: #{_lambda_.1} parent=1 // pred_region
      %s53 = ssub.s32 128, 128
      %54 = vsyncadd [#allocation9], %s53
      %s56 = sshll.u32 [#allocation8], 4
      %s57 = int_to_ptr.vmem [resolvable:$true] %s56
      %59 = dma.hbm_to_vmem [thread:$0]  %s3, 128, %s57, [#allocation9]
    $region17: #{_lambda_.1} parent=1 // pred_fallthru
      _
    // Predicated region
    $region18: #{_lambda_.1} parent=1 // pred_check
      _
    $region19: #{_lambda_.1} parent=1 // pred_check_branch
      %61 = sbr.rel (0) target = $region21
    $region20: #{_lambda_.1} parent=1 // pred_region
      %s63 = ssub.s32 512, 512
      %64 = vsyncadd [#allocation9], %s63
      %s65 = sshll.u32 [#allocation10], 4
      %s66 = int_to_ptr.vmem [resolvable:$true] %s65
      %71 = dma.hbm_to_vmem [thread:$0]  %s4, 512, %s66, [#allocation9], 128, 128, 8
    $region21: #{_lambda_.1} parent=1 // pred_fallthru
      _
    // Predicated region
    $region22: #{_lambda_.1} parent=1 // pred_check
      _
    $region23: #{_lambda_.1} parent=1 // pred_check_branch
      %73 = sbr.rel (0) target = $region25
    $region24: #{_lambda_.1} parent=1 // pred_region
      %74 = dma.done [#allocation3], 1024
    $region25: #{_lambda_.1} parent=1 // pred_fallthru
      _
    // Predicated region
    $region26: #{_lambda_.1} parent=1 // pred_check
      _
    $region27: #{_lambda_.1} parent=1 // pred_check_branch
      %76 = sbr.rel (0) target = $region29
    $region28: #{_lambda_.1} parent=1 // pred_region
      %77 = dma.done [#allocation6], 256
    $region29: #{_lambda_.1} parent=1 // pred_fallthru
      _
    // Predicated region
    $region30: #{_lambda_.1} parent=1 // pred_check
      _
    $region31: #{_lambda_.1} parent=1 // pred_check_branch
      %79 = sbr.rel (0) target = $region33
    $region32: #{_lambda_.1} parent=1 // pred_region
      %80 = dma.done [#allocation6], 512
    $region33: #{_lambda_.1} parent=1 // pred_fallthru
      _
    // Predicated region
    $region34: #{_lambda_.1} parent=1 // pred_check
      _
    $region35: #{_lambda_.1} parent=1 // pred_check_branch
      %82 = sbr.rel (0) target = $region37
    $region36: #{_lambda_.1} parent=1 // pred_region
      %83 = dma.done [#allocation9], 128
    $region37: #{_lambda_.1} parent=1 // pred_fallthru
      _
    // Predicated region
    $region38: #{_lambda_.1} parent=1 // pred_check
      _
    $region39: #{_lambda_.1} parent=1 // pred_check_branch
      %85 = sbr.rel (0) target = $region41
    $region40: #{_lambda_.1} parent=1 // pred_region
      %86 = dma.done [#allocation9], 512
    $region41: #{_lambda_.1} parent=1 // pred_fallthru
      _
    %v88 = vlaneseq
    %v89 = vand.u32 %v88, 127
    %v90 = vld [vmem:[#allocation2] sm:$0xff]
    %v91 = vld [vmem:[#allocation2 + $0x8] sm:$0xff]
    %v92 = vld [vmem:[#allocation2 + $0x10] sm:$0xff]
    %v93 = vld [vmem:[#allocation2 + $0x18] sm:$0xff]
    %vm94 = vcmp.eq.s32.totalorder %v89, 0
    %95 = vrot.lane.b32.xlu0 %v90, 1
    %v96 = vpop.permute.xlu0 %95
    %97 = vrot.lane.b32.xlu0 %v91, 1
    %v98 = vpop.permute.xlu0 %97
    %99 = vrot.lane.b32.xlu0 %v92, 1
    %v100 = vpop.permute.xlu0 %99
    %101 = vrot.lane.b32.xlu0 %v93, 1
    %v102 = vpop.permute.xlu0 %101
    %v103 = vsel %vm94, 0.0, %v96
    %v104 = vsel %vm94, 0.0, %v98
    %v105 = vsel %vm94, 0.0, %v100
    %v106 = vsel %vm94, 0.0, %v102
    %vm107 = vcmp.eq.s32.totalorder %v89, 127
    %108 = vrot.lane.b32.xlu0 %v90, 127
    %v109 = vpop.permute.xlu0 %108
    %110 = vrot.lane.b32.xlu0 %v91, 127
    %v111 = vpop.permute.xlu0 %110
    %112 = vrot.lane.b32.xlu0 %v92, 127
    %v113 = vpop.permute.xlu0 %112
    %114 = vrot.lane.b32.xlu0 %v93, 127
    %v115 = vpop.permute.xlu0 %114
    %v116 = vsel %vm107, 0.0, %v109
    %v117 = vsel %vm107, 0.0, %v111
    %v118 = vsel %vm107, 0.0, %v113
    %v119 = vsel %vm107, 0.0, %v115
    %v120 = vpack.c.bf16 %v104, %v103
    %v121 = vpack.c.bf16 %v106, %v105
    %v122 = vpack.c.bf16 %v91, %v90
    %v123 = vpack.c.bf16 %v93, %v92
    %v124 = vpack.c.bf16 %v117, %v116
    %v125 = vpack.c.bf16 %v119, %v118
    %s126 = scalar_lea.vmem [#allocation2], 32
    %v127 = vld [vmem:[%s126] sm:$0xff]
    %v128 = vld [vmem:[%s126 + $0x8] sm:$0xff]
    %v129 = vld [vmem:[%s126 + $0x10] sm:$0xff]
    %v130 = vld [vmem:[%s126 + $0x18] sm:$0xff]
    %131 = vrot.lane.b32.xlu0 %v127, 1
    %v132 = vpop.permute.xlu0 %131
    %133 = vrot.lane.b32.xlu0 %v128, 1
    %v134 = vpop.permute.xlu0 %133
    %135 = vrot.lane.b32.xlu0 %v129, 1
    %v136 = vpop.permute.xlu0 %135
    %137 = vrot.lane.b32.xlu0 %v130, 1
    %v138 = vpop.permute.xlu0 %137
    %v139 = vsel %vm94, 0.0, %v132
    %v140 = vsel %vm94, 0.0, %v134
    %v141 = vsel %vm94, 0.0, %v136
    %v142 = vsel %vm94, 0.0, %v138
    %143 = vrot.lane.b32.xlu0 %v127, 127
    %v144 = vpop.permute.xlu0 %143
    %145 = vrot.lane.b32.xlu0 %v128, 127
    %v146 = vpop.permute.xlu0 %145
    %147 = vrot.lane.b32.xlu0 %v129, 127
    %v148 = vpop.permute.xlu0 %147
    %149 = vrot.lane.b32.xlu0 %v130, 127
    %v150 = vpop.permute.xlu0 %149
    %v151 = vsel %vm107, 0.0, %v144
    %v152 = vsel %vm107, 0.0, %v146
    %v153 = vsel %vm107, 0.0, %v148
    %v154 = vsel %vm107, 0.0, %v150
    %v155 = vpack.c.bf16 %v140, %v139
    %v156 = vpack.c.bf16 %v142, %v141
    %v157 = vpack.c.bf16 %v128, %v127
    %v158 = vpack.c.bf16 %v130, %v129
    %v159 = vpack.c.bf16 %v152, %v151
    %v160 = vpack.c.bf16 %v154, %v153
    %v161 = vld [vmem:[#allocation5] sm:$0xf]
    %v162 = vld [vmem:[#allocation5 + $0x4] sm:$0xf]
    %v163 = vld [vmem:[#allocation5 + $0x8] sm:$0xf]
    %v164 = vld [vmem:[#allocation5 + $0xc] sm:$0xf]
    %v165 = vld [vmem:[#allocation7] sm:$0xff]
    %v166 = vld [vmem:[#allocation7 + $0x8] sm:$0xff]
    %v167 = vld [vmem:[#allocation7 + $0x10] sm:$0xff]
    %v168 = vld [vmem:[#allocation7 + $0x18] sm:$0xff]
    %170 = vset.pattern.permute.xlu0 0
    %171 = vperm.xlu0 %170, %v165
    %v172 = vpop.permute.xlu0 %171
    %175 = vset.pattern.permute.xlu0 0
    %176 = vperm.xlu0 %175, %v166
    %v177 = vpop.permute.xlu0 %176
    %180 = vset.pattern.permute.xlu0 0
    %181 = vperm.xlu0 %180, %v167
    %v182 = vpop.permute.xlu0 %181
    %185 = vset.pattern.permute.xlu0 0
    %186 = vperm.xlu0 %185, %v168
    %v187 = vpop.permute.xlu0 %186
    %v193 = vunpack.c.l.b16 %v161
    %v194 = vunpack.c.l.b16 %v162
    %v195 = vunpack.c.l.b16 %v163
    %v196 = vunpack.c.l.b16 %v164
    %v197 = vpack.c.b16 %v194, %v193
    %v198 = vpack.c.b16 %v196, %v195
    %vm199 = vcmask 785408
    %v201 = vsel %vm199, %v197, 0
    %v204 = vsel %vm199, %v198, 0
    %206 = vmatprep.subr.bf16.mxu0 0
    %207 = vmatpush1.bf16.msra.mxu0 0
    %208 = vmatprep.subr.bf16.mxu0 0
    %209 = vmatpush1.bf16.msra.mxu0 0
    %210 = vmatprep.subr.bf16.mxu0 %v160
    %211 = vmatpush1.bf16.msra.mxu0 %v125
    %212 = vmatprep.subr.bf16.mxu0 %v159
    %213 = vmatpush1.bf16.msra.mxu0 %v124
    %214 = vmatprep.subr.bf16.mxu0 %v158
    %215 = vmatpush1.bf16.msra.mxu0 %v123
    %216 = vmatprep.subr.bf16.mxu0 %v157
    %217 = vmatpush1.bf16.msra.mxu0 %v122
    %218 = vmatprep.subr.bf16.mxu0 %v156
    %219 = vmatpush1.bf16.msra.mxu0 %v121
    %220 = vmatprep.subr.bf16.mxu0 %v155
    %221 = vmatpush1.bf16.msra.mxu0 %v120
    %222 = vmatprep.subr.bf16.mxu0 0
    %223 = vmatpush2.bf16.msra.mxu0 0
    %224 = vmatprep.subr.bf16.mxu0 0
    %225 = vmatpush2.bf16.msra.mxu0 0
    %226 = vmatprep.subr.bf16.mxu0 0
    %227 = vmatpush2.bf16.msra.mxu0 0
    %228 = vmatprep.subr.bf16.mxu0 0
    %229 = vmatpush2.bf16.msra.mxu0 0
    %230 = vmatprep.subr.bf16.mxu0 0
    %231 = vmatpush2.bf16.msra.mxu0 0
    %232 = vmatprep.subr.bf16.mxu0 0
    %233 = vmatpush2.bf16.msra.mxu0 0
    %234 = vmatprep.subr.bf16.mxu0 0
    %235 = vmatpush2.bf16.msra.mxu0 0
    %236 = vmatprep.subr.bf16.mxu0 0
    %237 = vmatpush2.bf16.msra.mxu0 0
    %238 = vmatprep.mubr.bf16.mxu0 0
    %239 = vmatmul.mubr.bf16.gmra.mxu0 %v201
    %v240 = vpop.f32.mrf.mxu0
    %v241 = vadd.f32 %v172, %v240
    %v242 = vpop.f32.mrf.mxu0
    %v243 = vadd.f32 %v172, %v242
    %v244 = vpop.f32.mrf.mxu0
    %v245 = vadd.f32 %v177, %v244
    %v246 = vpop.f32.mrf.mxu0
    %v247 = vadd.f32 %v177, %v246
    %248 = vmatprep.mubr.bf16.mxu0 0
    %249 = vmatmul.mubr.bf16.gmra.mxu0 %v204
    %v250 = vpop.f32.mrf.mxu0
    %v251 = vadd.f32 %v182, %v250
    %v252 = vpop.f32.mrf.mxu0
    %v253 = vadd.f32 %v182, %v252
    %v254 = vpop.f32.mrf.mxu0
    %v255 = vadd.f32 %v187, %v254
    %v256 = vpop.f32.mrf.mxu0
    %v257 = vadd.f32 %v187, %v256
    %258 = vdwg.mxu0
    %v259 = vmax.f32 %v241, 0.0
    %v260 = vmax.f32 %v243, 0.0
    %v261 = vmax.f32 %v245, 0.0
    %v262 = vmax.f32 %v247, 0.0
    %v263 = vmax.f32 %v251, 0.0
    %v264 = vmax.f32 %v253, 0.0
    %v265 = vmax.f32 %v255, 0.0
    %v266 = vmax.f32 %v257, 0.0
    %267 = vadd.xlane.f32.xlu0 %v259
    %v268 = vpop.xlane.xlu0 %267
    %269 = vadd.xlane.f32.xlu0 %v261
    %v270 = vpop.xlane.xlu0 %269
    %271 = vadd.xlane.f32.xlu0 %v263
    %v272 = vpop.xlane.xlu0 %271
    %273 = vadd.xlane.f32.xlu0 %v265
    %v274 = vpop.xlane.xlu0 %273
    %v275 = vmul.f32 %v268, 0.0078125
    %v276 = vmul.f32 %v270, 0.0078125
    %v277 = vmul.f32 %v272, 0.0078125
    %v278 = vmul.f32 %v274, 0.0078125
    %279 = vadd.xlane.f32.xlu0 %v260
    %v280 = vpop.xlane.xlu0 %279
    %281 = vadd.xlane.f32.xlu0 %v262
    %v282 = vpop.xlane.xlu0 %281
    %283 = vadd.xlane.f32.xlu0 %v264
    %v284 = vpop.xlane.xlu0 %283
    %285 = vadd.xlane.f32.xlu0 %v266
    %v286 = vpop.xlane.xlu0 %285
    %v287 = vmul.f32 %v280, 0.0078125
    %v288 = vmul.f32 %v282, 0.0078125
    %v289 = vmul.f32 %v284, 0.0078125
    %v290 = vmul.f32 %v286, 0.0078125
    %vm291 = vcmask 7168
    %v292 = vsel %vm291, %v275, %v287
    %v293 = vsel %vm291, %v276, %v288
    %v294 = vsel %vm291, %v277, %v289
    %v295 = vsel %vm291, %v278, %v290
    %v296 = vld [vmem:[#allocation8] sm:$0xff]
    %vm297 = vcmask 261120
    %v299 = vsel %vm297, %v296, 0
    %301 = vmatprep.subr.mxu0 0.0
    %302 = vmatpush1.msra.mxu0 0.0
    %303 = vmatprep.subr.mxu0 0.0
    %304 = vmatpush1.msra.mxu0 0.0
    %305 = vmatprep.subr.mxu0 0.0
    %306 = vmatpush1.msra.mxu0 0.0
    %307 = vmatprep.subr.mxu0 0.0
    %308 = vmatpush1.msra.mxu0 0.0
    %309 = vmatprep.subr.mxu0 0.0
    %310 = vmatpush1.msra.mxu0 0.0
    %311 = vmatprep.subr.mxu0 0.0
    %312 = vmatpush1.msra.mxu0 0.0
    %313 = vmatprep.subr.mxu0 0.0
    %314 = vmatpush1.msra.mxu0 0.0
    %315 = vmatprep.subr.mxu0 0.0
    %316 = vmatpush1.msra.mxu0 0.0
    %317 = vmatprep.subr.mxu0 0.0
    %318 = vmatpush1.msra.mxu0 0.0
    %319 = vmatprep.subr.mxu0 0.0
    %320 = vmatpush1.msra.mxu0 0.0
    %321 = vmatprep.subr.mxu0 0.0
    %322 = vmatpush1.msra.mxu0 0.0
    %323 = vmatprep.subr.mxu0 0.0
    %324 = vmatpush1.msra.mxu0 0.0
    %325 = vmatprep.subr.mxu0 0.0
    %326 = vmatpush1.msra.mxu0 %v295
    %327 = vmatprep.subr.mxu0 0.0
    %328 = vmatpush1.msra.mxu0 %v294
    %329 = vmatprep.subr.mxu0 0.0
    %330 = vmatpush1.msra.mxu0 %v293
    %331 = vmatprep.subr.mxu0 0.0
    %332 = vmatpush1.msra.mxu0 %v292
    %333 = vmatprep.subr.mxu0 0.0
    %334 = vmatpush2.msra.mxu0 0.0
    %335 = vmatprep.subr.mxu0 0.0
    %336 = vmatpush2.msra.mxu0 0.0
    %337 = vmatprep.subr.mxu0 0.0
    %338 = vmatpush2.msra.mxu0 0.0
    %339 = vmatprep.subr.mxu0 0.0
    %340 = vmatpush2.msra.mxu0 0.0
    %341 = vmatprep.subr.mxu0 0.0
    %342 = vmatpush2.msra.mxu0 0.0
    %343 = vmatprep.subr.mxu0 0.0
    %344 = vmatpush2.msra.mxu0 0.0
    %345 = vmatprep.subr.mxu0 0.0
    %346 = vmatpush2.msra.mxu0 0.0
    %347 = vmatprep.subr.mxu0 0.0
    %348 = vmatpush2.msra.mxu0 0.0
    %349 = vmatprep.subr.mxu0 0.0
    %350 = vmatpush2.msra.mxu0 0.0
    %351 = vmatprep.subr.mxu0 0.0
    %352 = vmatpush2.msra.mxu0 0.0
    %353 = vmatprep.subr.mxu0 0.0
    %354 = vmatpush2.msra.mxu0 0.0
    %355 = vmatprep.subr.mxu0 0.0
    %356 = vmatpush2.msra.mxu0 0.0
    %357 = vmatprep.subr.mxu0 0.0
    %358 = vmatpush2.msra.mxu0 0.0
    %359 = vmatprep.subr.mxu0 0.0
    %360 = vmatpush2.msra.mxu0 0.0
    %361 = vmatprep.subr.mxu0 0.0
    %362 = vmatpush2.msra.mxu0 0.0
    %363 = vmatprep.subr.mxu0 0.0
    %364 = vmatpush2.msra.mxu0 0.0
    %365 = vmatprep.mubr.f32.mxu0 0.0
    %366 = vmatmul.mubr.f32.gmra.mxu0 %v299
    %v367 = vpop.f32.mrf.mxu0
    %v368 = vadd.f32 0.0, %v367
    %v369 = vpop.f32.mrf.mxu0
    %370 = vdwg.mxu0
    %v371 = vmax.f32 %v368, 0.0
    %v372 = vld [vmem:[#allocation10] sm:$0xff]
    %v373 = vld [vmem:[#allocation10 + $0x8] sm:$0xff]
    %v374 = vld [vmem:[#allocation10 + $0x10] sm:$0xff]
    %v375 = vld [vmem:[#allocation10 + $0x18] sm:$0xff]
    %vm376 = vcmask 64512
    %v378 = vsel %vm376, %v372, 0
    %v381 = vsel %vm376, %v373, 0
    %v384 = vsel %vm376, %v374, 0
    %v387 = vsel %vm376, %v375, 0
    %389 = vmatprep.subr.mxu0 0.0
    %390 = vmatpush1.msra.mxu0 0.0
    %391 = vmatprep.subr.mxu0 0.0
    %392 = vmatpush1.msra.mxu0 0.0
    %393 = vmatprep.subr.mxu0 0.0
    %394 = vmatpush1.msra.mxu0 0.0
    %395 = vmatprep.subr.mxu0 0.0
    %396 = vmatpush1.msra.mxu0 0.0
    %397 = vmatprep.subr.mxu0 0.0
    %398 = vmatpush1.msra.mxu0 0.0
    %399 = vmatprep.subr.mxu0 0.0
    %400 = vmatpush1.msra.mxu0 0.0
    %401 = vmatprep.subr.mxu0 0.0
    %402 = vmatpush1.msra.mxu0 0.0
    %403 = vmatprep.subr.mxu0 0.0
    %404 = vmatpush1.msra.mxu0 0.0
    %405 = vmatprep.subr.mxu0 0.0
    %406 = vmatpush1.msra.mxu0 0.0
    %407 = vmatprep.subr.mxu0 0.0
    %408 = vmatpush1.msra.mxu0 0.0
    %409 = vmatprep.subr.mxu0 0.0
    %410 = vmatpush1.msra.mxu0 0.0
    %411 = vmatprep.subr.mxu0 0.0
    %412 = vmatpush1.msra.mxu0 0.0
    %413 = vmatprep.subr.mxu0 0.0
    %414 = vmatpush1.msra.mxu0 0.0
    %415 = vmatprep.subr.mxu0 0.0
    %416 = vmatpush1.msra.mxu0 0.0
    %417 = vmatprep.subr.mxu0 0.0
    %418 = vmatpush1.msra.mxu0 0.0
    %419 = vmatprep.subr.mxu0 0.0
    %420 = vmatpush1.msra.mxu0 %v371
    %421 = vmatprep.subr.mxu0 0.0
    %422 = vmatpush2.msra.mxu0 0.0
    %423 = vmatprep.subr.mxu0 0.0
    %424 = vmatpush2.msra.mxu0 0.0
    %425 = vmatprep.subr.mxu0 0.0
    %426 = vmatpush2.msra.mxu0 0.0
    %427 = vmatprep.subr.mxu0 0.0
    %428 = vmatpush2.msra.mxu0 0.0
    %429 = vmatprep.subr.mxu0 0.0
    %430 = vmatpush2.msra.mxu0 0.0
    %431 = vmatprep.subr.mxu0 0.0
    %432 = vmatpush2.msra.mxu0 0.0
    %433 = vmatprep.subr.mxu0 0.0
    %434 = vmatpush2.msra.mxu0 0.0
    %435 = vmatprep.subr.mxu0 0.0
    %436 = vmatpush2.msra.mxu0 0.0
    %437 = vmatprep.subr.mxu0 0.0
    %438 = vmatpush2.msra.mxu0 0.0
    %439 = vmatprep.subr.mxu0 0.0
    %440 = vmatpush2.msra.mxu0 0.0
    %441 = vmatprep.subr.mxu0 0.0
    %442 = vmatpush2.msra.mxu0 0.0
    %443 = vmatprep.subr.mxu0 0.0
    %444 = vmatpush2.msra.mxu0 0.0
    %445 = vmatprep.subr.mxu0 0.0
    %446 = vmatpush2.msra.mxu0 0.0
    %447 = vmatprep.subr.mxu0 0.0
    %448 = vmatpush2.msra.mxu0 0.0
    %449 = vmatprep.subr.mxu0 0.0
    %450 = vmatpush2.msra.mxu0 0.0
    %451 = vmatprep.subr.mxu0 0.0
    %452 = vmatpush2.msra.mxu0 0.0
    %453 = vmatprep.mubr.f32.mxu0 0.0
    %454 = vmatmul.mubr.f32.gmra.mxu0 %v378
    %v455 = vpop.f32.mrf.mxu0
    %v456 = vadd.f32 0.0, %v455
    %v457 = vpop.f32.mrf.mxu0
    %458 = vmatprep.mubr.f32.mxu0 0.0
    %459 = vmatmul.mubr.f32.gmra.mxu0 %v381
    %v460 = vpop.f32.mrf.mxu0
    %v461 = vadd.f32 0.0, %v460
    %v462 = vpop.f32.mrf.mxu0
    %463 = vmatprep.mubr.f32.mxu0 0.0
    %464 = vmatmul.mubr.f32.gmra.mxu0 %v384
    %v465 = vpop.f32.mrf.mxu0
    %v466 = vadd.f32 0.0, %v465
    %v467 = vpop.f32.mrf.mxu0
    %468 = vmatprep.mubr.f32.mxu0 0.0
    %469 = vmatmul.mubr.f32.gmra.mxu0 %v387
    %v470 = vpop.f32.mrf.mxu0
    %v471 = vadd.f32 0.0, %v470
    %v472 = vpop.f32.mrf.mxu0
    %473 = vdwg.mxu0
    %v474 = vxor.u32 %v456, 2147483648
    %v475 = vxor.u32 %v461, 2147483648
    %v476 = vxor.u32 %v466, 2147483648
    %v477 = vxor.u32 %v471, 2147483648
    %v478 = vmul.f32 %v474, 1.442695
    %v479 = vpow.pop %v478
    %v480 = vmul.f32 %v475, 1.442695
    %v481 = vpow.pop %v480
    %v482 = vmul.f32 %v476, 1.442695
    %v483 = vpow.pop %v482
    %v484 = vmul.f32 %v477, 1.442695
    %v485 = vpow.pop %v484
    %v486 = vadd.f32 %v479, 1.0
    %v487 = vadd.f32 %v481, 1.0
    %v488 = vadd.f32 %v483, 1.0
    %v489 = vadd.f32 %v485, 1.0
    %v490 = vrcp.pop %v486
    %v491 = vmul.f32 1.0, %v490
    %v492 = vrcp.pop %v487
    %v493 = vmul.f32 1.0, %v492
    %v494 = vrcp.pop %v488
    %v495 = vmul.f32 1.0, %v494
    %v496 = vrcp.pop %v489
    %v497 = vmul.f32 1.0, %v496
    %499 = vset.pattern.permute.xlu0 0
    %500 = vperm.xlu0 %499, %v491
    %v501 = vpop.permute.xlu0 %500
    %504 = vset.pattern.permute.xlu0 0
    %505 = vperm.xlu0 %504, %v493
    %v506 = vpop.permute.xlu0 %505
    %509 = vset.pattern.permute.xlu0 0
    %510 = vperm.xlu0 %509, %v495
    %v511 = vpop.permute.xlu0 %510
    %514 = vset.pattern.permute.xlu0 0
    %515 = vperm.xlu0 %514, %v497
    %v516 = vpop.permute.xlu0 %515
    %v518 = vmul.f32 %v259, %v501
    %v519 = vmul.f32 %v261, %v506
    %v520 = vmul.f32 %v263, %v511
    %v521 = vmul.f32 %v265, %v516
    %v522 = vadd.f32 %v90, %v518
    %v523 = vadd.f32 %v91, %v519
    %v524 = vadd.f32 %v92, %v520
    %v525 = vadd.f32 %v93, %v521
    %526 = vst [vmem:[#allocation11] sm:$0xff] %v522
    %527 = vst [vmem:[#allocation11 + $0x8] sm:$0xff] %v523
    %528 = vst [vmem:[#allocation11 + $0x10] sm:$0xff] %v524
    %529 = vst [vmem:[#allocation11 + $0x18] sm:$0xff] %v525
    %v530 = vld [vmem:[%s126] sm:$0xff]
    %v531 = vld [vmem:[%s126 + $0x8] sm:$0xff]
    %v532 = vld [vmem:[%s126 + $0x10] sm:$0xff]
    %v533 = vld [vmem:[%s126 + $0x18] sm:$0xff]
    %534 = vset.pattern.permute.xlu0 1
    %535 = vperm.xlu0 %534, %v491
    %v536 = vpop.permute.xlu0 %535
    %538 = vset.pattern.permute.xlu0 1
    %539 = vperm.xlu0 %538, %v493
    %v540 = vpop.permute.xlu0 %539
    %542 = vset.pattern.permute.xlu0 1
    %543 = vperm.xlu0 %542, %v495
    %v544 = vpop.permute.xlu0 %543
    %546 = vset.pattern.permute.xlu0 1
    %547 = vperm.xlu0 %546, %v497
    %v548 = vpop.permute.xlu0 %547
    %v550 = vmul.f32 %v260, %v536
    %v551 = vmul.f32 %v262, %v540
    %v552 = vmul.f32 %v264, %v544
    %v553 = vmul.f32 %v266, %v548
    %v554 = vadd.f32 %v530, %v550
    %v555 = vadd.f32 %v531, %v551
    %v556 = vadd.f32 %v532, %v552
    %v557 = vadd.f32 %v533, %v553
    %s558 = scalar_lea.vmem [#allocation11], 32
    %559 = vst [vmem:[%s558] sm:$0xff] %v554
    %560 = vst [vmem:[%s558 + $0x8] sm:$0xff] %v555
    %561 = vst [vmem:[%s558 + $0x10] sm:$0xff] %v556
    %562 = vst [vmem:[%s558 + $0x18] sm:$0xff] %v557
    // Predicated region
    $region42: #{_lambda_.1} parent=1 // pred_check
      _
    $region43: #{_lambda_.1} parent=1 // pred_check_branch
      %564 = sbr.rel (0) target = $region45
    $region44: #{_lambda_.1} parent=1 // pred_region
      %s566 = ssub.s32 1024, 1024
      %567 = vsyncadd [#allocation4], %s566
      %s568 = sshll.u32 [#allocation11], 4
      %s569 = int_to_ptr.vmem [resolvable:$true] %s568
      %574 = dma.vmem_to_hbm [thread:$0]  %s569, 1024, %s5, [#allocation4], 128, 128, 8
    $region45: #{_lambda_.1} parent=1 // pred_fallthru
      _
    // Predicated region
    $region46: #{_lambda_.1} parent=1 // pred_check
      _
    $region47: #{_lambda_.1} parent=1 // pred_check_branch
      %576 = sbr.rel (0) target = $region49
    $region48: #{_lambda_.1} parent=1 // pred_region
      %577 = dma.done [#allocation4], 1024
    $region49: #{_lambda_.1} parent=1 // pred_fallthru
      _
    %578 = vsyncpa [#allocation3], 1
    %579 = vsyncpa [#allocation6], 1
    %580 = vsyncpa [#allocation9], 1
    %581 = vsyncpa [#allocation4], 1

</llo_original>
